<compile_context>
chip_gen: v5e
topology: v5e:2x2
jax: 0.10.0
libtpu: 0.0.40
codegen_flags: <defaults>
</compile_context>

<pallas_src>
import functools

import numpy as np
import jax
import jax.numpy as jnp
from jax.experimental import pallas as pl
from jax.experimental.pallas import tpu as pltpu


_VMEM_LIMIT_BYTES = 32 * 1024 * 1024     # explicit scoped-VMEM limit (v7x safe)
_VMEM_BUDGET = 20 * 1024 * 1024          # per-step footprint target with headroom


def _vmem_bytes_per_step(bt, seq_len, k_pad, c1, c2, dh, t):
    """Rough per-grid-step VMEM footprint used to cap the batch tile."""
    m = bt * seq_len
    lhs = 2 * m * k_pad * 2                          # bf16 input block, double-buffered
    inter = m * (3 * c1 + 2 * c2 + dh + t) * 4       # f32 live intermediates (approx)
    out = 2 * bt * t * c2 * 4                        # f32 output block, double-buffered
    wts = 2 * (k_pad * 3 * c1 + c1 * c2 + c2 * dh + dh * t) * 2 + 2 * 5 * max(c2, dh) * 4
    return lhs + inter + out + wts


# ----------------------------------------------------------------------------
# Fused Pallas kernel: FiLM conv stem + 1x1 projection + TokenLearnerModuleV11
# ----------------------------------------------------------------------------
def _image_tokenizer_kernel(lhs_ref, wstem_ref, w2_ref, pp_ref,
                            wa1_ref, ba1_ref, wa2_ref, ba2_ref, out_ref,
                            *, batch_tile, seq_len, stem_channels,
                            embed_dim, num_tokens):
    f32 = jnp.float32
    bf16 = jnp.bfloat16
    C1, C2, T = stem_channels, embed_dim, num_tokens

    lhs = lhs_ref[0]                                          # (bt*S, Kp) bf16

    # --- FiLM conv stem: ONE fused MXU pass produces [h | gamma | beta], with
    #     conv/FiLM biases folded in via the ones-column of the LHS (N = 96).
    hgb = jnp.dot(lhs, wstem_ref[...], preferred_element_type=f32)
    h = hgb[:, :C1]
    gamma = hgb[:, C1:2 * C1]
    beta = hgb[:, 2 * C1:3 * C1]
    h = h * (1.0 + gamma) + beta
    h = h * jax.nn.sigmoid(h)                                 # SiLU (sigmoid on EUP)

    # --- 1x1 projection to embedding dim; feature map stays in VMEM.
    pp = pp_ref[...]                                          # rows: b2 | ln_g | ln_b
    feat = jnp.dot(h.astype(bf16), w2_ref[...],
                   preferred_element_type=f32) + pp[0:1, :]   # (bt*S, C2)

    # --- TokenLearnerModuleV11 ------------------------------------------------
    mu = jnp.mean(feat, axis=-1, keepdims=True)
    var = jnp.mean(jnp.square(feat - mu), axis=-1, keepdims=True)
    xn = (feat - mu) * jax.lax.rsqrt(var + 1e-5)
    xn = xn * pp[1:2, :] + pp[2:3, :]

    a = jnp.dot(xn.astype(bf16), wa1_ref[...],
                preferred_element_type=f32) + ba1_ref[...]
    a = jax.nn.gelu(a)                                        # dropout = identity
    logits = jnp.dot(a.astype(bf16), wa2_ref[...],
                     preferred_element_type=f32) + ba2_ref[...]   # (bt*S, T)

    # Batched spatial softmax + token pooling (no per-image python loop).
    # Transpose (S, T) -> (T, S) so the softmax reduces over the lane axis and
    # the pooling einsum is in canonical batched-matmul orientation.
    lg = jnp.swapaxes(logits.reshape(batch_tile, seq_len, T), 1, 2)   # (bt, T, S)
    lg = lg - jnp.max(lg, axis=-1, keepdims=True)
    e = jnp.exp(lg)
    attn = e * pl.reciprocal(jnp.sum(e, axis=-1, keepdims=True), approx=True)
    feat3 = feat.astype(bf16).reshape(batch_tile, seq_len, C2)
    tokens = jnp.einsum('bts,bsc->btc', attn.astype(bf16), feat3,
                        preferred_element_type=f32)                  # (bt, T, C2)
    out_ref[0] = tokens.reshape(batch_tile * T, C2).astype(out_ref.dtype)


# ----------------------------------------------------------------------------
# Glue: im2col for the 3x3 stride-2 stem conv (NHWC)
# ----------------------------------------------------------------------------
def _im2col(x_nhwc, ksize=3, stride=2, pad=1):
    B, H, W, C = x_nhwc.shape
    xp = jnp.pad(x_nhwc, ((0, 0), (pad, pad), (pad, pad), (0, 0)))
    Ho = (H + 2 * pad - ksize) // stride + 1
    Wo = (W + 2 * pad - ksize) // stride + 1
    cols = []
    for i in range(ksize):
        for j in range(ksize):
            cols.append(xp[:, i:i + stride * (Ho - 1) + 1:stride,
                           j:j + stride * (Wo - 1) + 1:stride, :])
    patches = jnp.concatenate(cols, axis=-1)                  # (B, Ho, Wo, k*k*C)
    return patches.reshape(B, Ho * Wo, ksize * ksize * C), Ho, Wo


# ----------------------------------------------------------------------------
# ImageTokenizer module (Pallas-backed forward)
# ----------------------------------------------------------------------------
class ImageTokenizerPallas:
    def __init__(self, *, in_channels=3, text_dim=16, stem_channels=32,
                 embed_dim=48, num_tokens=8, bottleneck_dim=64,
                 dropout_rate=0.1, seed=42):
        self.num_tokens = num_tokens
        self.embed_dim = embed_dim
        self.stem_channels = stem_channels
        self.text_dim = text_dim
        self.dropout_rate = dropout_rate          # inference-mode identity

        K = 3 * 3 * in_channels
        self._k_patch = K
        self._fused_in = K + text_dim + 1          # [patches | text | ones]
        self._k_padded = ((self._fused_in + 15) // 16) * 16   # bf16 sublane packing

        keys = jax.random.split(jax.random.PRNGKey(seed), 12)
        s = 0.05
        # stem conv weight flattened as (kh, kw, c_in) x C1 to match im2col order
        self.w1 = jax.random.normal(keys[0], (K, stem_channels), jnp.float32) * s
        self.b1 = jax.random.normal(keys[1], (1, stem_channels), jnp.float32) * s
        # FiLM generator (mult / add branches)
        self.wg = jax.random.normal(keys[2], (text_dim, stem_channels), jnp.float32) * s
        self.bg = jax.random.normal(keys[3], (1, stem_channels), jnp.float32) * s
        self.wb = jax.random.normal(keys[4], (text_dim, stem_channels), jnp.float32) * s
        self.bb = jax.random.normal(keys[5], (1, stem_channels), jnp.float32) * s
        # 1x1 projection to embed_dim
        self.w2 = jax.random.normal(keys[6], (stem_channels, embed_dim), jnp.float32) * s
        self.b2 = jax.random.normal(keys[7], (1, embed_dim), jnp.float32) * s
        # TokenLearnerV1.1 params
        self.ln_g = jnp.ones((1, embed_dim), jnp.float32)
        self.ln_b = jnp.zeros((1, embed_dim), jnp.float32)
        self.wa1 = jax.random.normal(keys[8], (embed_dim, bottleneck_dim), jnp.float32) * s
        self.ba1 = jax.random.normal(keys[9], (1, bottleneck_dim), jnp.float32) * s
        self.wa2 = jax.random.normal(keys[10], (bottleneck_dim, num_tokens), jnp.float32) * s
        self.ba2 = jax.random.normal(keys[11], (1, num_tokens), jnp.float32) * s

        # Fused stem RHS built once: [[w1 0 0], [0 wg wb], [b1 bg bb], [0-pad]]
        C1 = stem_channels
        wstem = jnp.zeros((self._k_padded, 3 * C1), jnp.float32)
        wstem = wstem.at[:K, :C1].set(self.w1)
        wstem = wstem.at[K:K + text_dim, C1:2 * C1].set(self.wg)
        wstem = wstem.at[K:K + text_dim, 2 * C1:].set(self.wb)
        wstem = wstem.at[K + text_dim, :C1].set(self.b1[0])
        wstem = wstem.at[K + text_dim, C1:2 * C1].set(self.bg[0])
        wstem = wstem.at[K + text_dim, 2 * C1:].set(self.bb[0])
        self.w_stem_fused = wstem
        # b2 | ln_gamma | ln_beta stacked into one (3, C2) ref (fewer DMA streams)
        self.proj_params = jnp.concatenate([self.b2, self.ln_g, self.ln_b], axis=0)

    @property
    def tokens_per_context_image(self):
        return self.num_tokens

    def __call__(self, images_nchw, text_embeddings):
        x = jnp.transpose(images_nchw, (0, 2, 3, 1))              # NCHW -> NHWC
        patches, _, _ = _im2col(x, 3, 2, 1)                       # (B, S, K)
        B, S, K = patches.shape
        Td = self.text_dim
        C1, C2 = self.stem_channels, self.embed_dim
        Dh = self.wa1.shape[1]
        T = self.num_tokens
        Kp = self._k_padded

        # Fused-stem LHS = [patches | text | 1], zero-padded on the contraction dim.
        text_b = jnp.broadcast_to(
            text_embeddings[:, None, :].astype(patches.dtype), (B, S, Td))
        ones = jnp.ones((B, S, 1), patches.dtype)
        lhs = jnp.concatenate([patches, text_b, ones], axis=-1)   # (B, S, K+Td+1)
        if Kp > self._fused_in:
            lhs = jnp.pad(lhs, ((0, 0), (0, 0), (0, Kp - self._fused_in)))

        # --- batch-tile selection: ~2048 M rows per step, >= 2 grid tiles when
        # B >= 2 (v7x megacore), capped by the per-step VMEM budget. -------------
        ROWS_TARGET = 2048
        bt = max(1, min(B, ROWS_TARGET // max(S, 1)))
        if B >= 2:
            bt = min(bt, -(-B // 2))
        while bt > 1 and _vmem_bytes_per_step(bt, S, Kp, C1, C2, Dh, T) > _VMEM_BUDGET:
            bt //= 2
        n_tiles = -(-B // bt)
        Bp = n_tiles * bt
        if Bp != B:
            lhs = jnp.pad(lhs, ((0, Bp - B), (0, 0), (0, 0)))
        lhs = lhs.reshape(n_tiles, bt * S, Kp).astype(jnp.bfloat16)

        kernel = functools.partial(
            _image_tokenizer_kernel, batch_tile=bt, seq_len=S,
            stem_channels=C1, embed_dim=C2, num_tokens=T)
        full2d = lambda i: (0, 0)

        out = pl.pallas_call(
            kernel,
            out_shape=jax.ShapeDtypeStruct((n_tiles, bt * T, C2), jnp.float32),
            grid=(n_tiles,),
            in_specs=[
                pl.BlockSpec((1, bt * S, Kp), lambda i: (i, 0, 0)),   # fused LHS
                pl.BlockSpec((Kp, 3 * C1), full2d),                   # fused stem RHS
                pl.BlockSpec((C1, C2), full2d),                       # w2
                pl.BlockSpec((3, C2), full2d),                        # b2|ln_g|ln_b
                pl.BlockSpec((C2, Dh), full2d),                       # wa1
                pl.BlockSpec((1, Dh), full2d),                        # ba1
                pl.BlockSpec((Dh, T), full2d),                        # wa2
                pl.BlockSpec((1, T), full2d),                         # ba2
            ],
            out_specs=pl.BlockSpec((1, bt * T, C2), lambda i: (i, 0, 0)),
            compiler_params=pltpu.CompilerParams(
                dimension_semantics=("parallel",),
                vmem_limit_bytes=_VMEM_LIMIT_BYTES),
        )(lhs,
          self.w_stem_fused.astype(jnp.bfloat16),
          self.w2.astype(jnp.bfloat16),
          self.proj_params,
          self.wa1.astype(jnp.bfloat16), self.ba1,
          self.wa2.astype(jnp.bfloat16), self.ba2)

        return out.reshape(Bp, T, C2)[:B]                 # (B, num_tokens, embed_dim)

    # Pure-JAX f32 reference for correctness checking.
    def reference(self, images_nchw, text_embeddings):
        x = jnp.transpose(images_nchw, (0, 2, 3, 1))
        patches, _, _ = _im2col(x, 3, 2, 1)
        h = patches @ self.w1 + self.b1
        gamma = text_embeddings @ self.wg + self.bg
        beta = text_embeddings @ self.wb + self.bb
        h = h * (1.0 + gamma[:, None, :]) + beta[:, None, :]
        h = h * jax.nn.sigmoid(h)
        feat = h @ self.w2 + self.b2
        mu = jnp.mean(feat, -1, keepdims=True)
        var = jnp.mean((feat - mu) ** 2, -1, keepdims=True)
        xn = (feat - mu) * jax.lax.rsqrt(var + 1e-5) * self.ln_g + self.ln_b
        a = jax.nn.gelu(xn @ self.wa1 + self.ba1)
        logits = a @ self.wa2 + self.ba2
        attn = jax.nn.softmax(logits, axis=1)             # softmax over space
        return jnp.einsum('bst,bsc->btc', attn, feat)


# ----------------------------------------------------------------------------
if __name__ == "__main__":
    key = jax.random.PRNGKey(0)
    k_img, k_txt = jax.random.split(key)

    B, Cin, H, W = 2, 3, 16, 16
    text_dim = 16
    images = jax.random.normal(k_img, (B, Cin, H, W), jnp.float32)
    text_embeddings = jax.random.normal(k_txt, (B, text_dim), jnp.float32)

    tokenizer = ImageTokenizerPallas(in_channels=Cin, text_dim=text_dim,
                                     stem_channels=32, embed_dim=48,
                                     num_tokens=8, bottleneck_dim=64,
                                     dropout_rate=0.1)

    out = tokenizer(images, text_embeddings)
    out = jax.block_until_ready(out)

    ref = tokenizer.reference(images, text_embeddings)
    # bf16 matmul inputs (f32 accumulation) + approx reciprocal -> looser tolerance
    np.testing.assert_allclose(np.asarray(out), np.asarray(ref), rtol=2e-2, atol=2e-2)
    assert out.shape == (B, tokenizer.tokens_per_context_image, tokenizer.embed_dim)

    print("KERNEL_OK")
</pallas_src>

<mosaic_0001>
module attributes {stable_mosaic.version = 11 : i64} {
  func.func @_image_tokenizer_kernel(%arg0: i32, %arg1: memref<1x64x48xbf16, #tpu.memory_space<vmem>>, %arg2: memref<48x96xbf16, #tpu.memory_space<vmem>>, %arg3: memref<32x48xbf16, #tpu.memory_space<vmem>>, %arg4: memref<3x48xf32, #tpu.memory_space<vmem>>, %arg5: memref<48x64xbf16, #tpu.memory_space<vmem>>, %arg6: memref<1x64xf32, #tpu.memory_space<vmem>>, %arg7: memref<64x8xbf16, #tpu.memory_space<vmem>>, %arg8: memref<1x8xf32, #tpu.memory_space<vmem>>, %arg9: memref<1x8x48xf32, #tpu.memory_space<vmem>>) attributes {dimension_semantics = [#tpu.dimension_semantics<parallel>], iteration_bounds = array<i64: 2>, scalar_prefetch = 0 : i64, scratch_operands = 0 : i64, tpu.core_type = #tpu.core_type<tc>, window_params = [{transform_indices = @transform_0, window_bounds = array<i64: 1, 64, 48>}, {pipeline_mode = #tpu.pipeline_mode<synchronous>, transform_indices = @transform_1, window_bounds = array<i64: 48, 96>}, {pipeline_mode = #tpu.pipeline_mode<synchronous>, transform_indices = @transform_2, window_bounds = array<i64: 32, 48>}, {pipeline_mode = #tpu.pipeline_mode<synchronous>, transform_indices = @transform_3, window_bounds = array<i64: 3, 48>}, {pipeline_mode = #tpu.pipeline_mode<synchronous>, transform_indices = @transform_4, window_bounds = array<i64: 48, 64>}, {pipeline_mode = #tpu.pipeline_mode<synchronous>, transform_indices = @transform_5, window_bounds = array<i64: 1, 64>}, {pipeline_mode = #tpu.pipeline_mode<synchronous>, transform_indices = @transform_6, window_bounds = array<i64: 64, 8>}, {pipeline_mode = #tpu.pipeline_mode<synchronous>, transform_indices = @transform_7, window_bounds = array<i64: 1, 8>}, {transform_indices = @transform_8, window_bounds = array<i64: 1, 8, 48>}]} {
    %c0 = arith.constant 0 : index
    %c0_0 = arith.constant 0 : index
    %c0_1 = arith.constant 0 : index
    %0 = vector.load %arg1[%c0, %c0_0, %c0_1] : memref<1x64x48xbf16, #tpu.memory_space<vmem>>, vector<1x64x48xbf16>
    %1 = vector.shape_cast %0 : vector<1x64x48xbf16> to vector<64x48xbf16>
    %c0_2 = arith.constant 0 : index
    %c0_3 = arith.constant 0 : index
    %2 = vector.load %arg2[%c0_2, %c0_3] : memref<48x96xbf16, #tpu.memory_space<vmem>>, vector<48x96xbf16>
    %cst = arith.constant dense<0.000000e+00> : vector<64x96xf32>
    %3 = tpu.matmul %1, %2, %cst {dimension_numbers = #tpu.dot_dimension_numbers<[1], [0], [0], [1], [0, 0, 1, 1], [], []>} : vector<64x48xbf16>, vector<48x96xbf16>, vector<64x96xf32> -> vector<64x96xf32>
    %4 = vector.extract_strided_slice %3 {offsets = [0, 0], sizes = [64, 32], strides = [1, 1]} : vector<64x96xf32> to vector<64x32xf32>
    %5 = vector.extract_strided_slice %3 {offsets = [0, 32], sizes = [64, 32], strides = [1, 1]} : vector<64x96xf32> to vector<64x32xf32>
    %6 = vector.extract_strided_slice %3 {offsets = [0, 64], sizes = [64, 32], strides = [1, 1]} : vector<64x96xf32> to vector<64x32xf32>
    %cst_4 = arith.constant 1.000000e+00 : f32
    %7 = vector.broadcast %cst_4 : f32 to vector<64x32xf32>
    %8 = arith.addf %7, %5 : vector<64x32xf32>
    %9 = arith.mulf %4, %8 : vector<64x32xf32>
    %10 = arith.addf %9, %6 : vector<64x32xf32>
    %11 = arith.negf %10 : vector<64x32xf32>
    %12 = math.exp %11 : vector<64x32xf32>
    %cst_5 = arith.constant 1.000000e+00 : f32
    %13 = vector.broadcast %cst_5 : f32 to vector<64x32xf32>
    %14 = arith.addf %13, %12 : vector<64x32xf32>
    %15 = arith.divf %13, %14 : vector<64x32xf32>
    %16 = arith.mulf %10, %15 : vector<64x32xf32>
    %c0_6 = arith.constant 0 : index
    %c0_7 = arith.constant 0 : index
    %17 = vector.load %arg4[%c0_6, %c0_7] : memref<3x48xf32, #tpu.memory_space<vmem>>, vector<3x48xf32>
    %18 = arith.truncf %16 : vector<64x32xf32> to vector<64x32xbf16>
    %c0_8 = arith.constant 0 : index
    %c0_9 = arith.constant 0 : index
    %19 = vector.load %arg3[%c0_8, %c0_9] : memref<32x48xbf16, #tpu.memory_space<vmem>>, vector<32x48xbf16>
    %cst_10 = arith.constant dense<0.000000e+00> : vector<64x48xf32>
    %20 = tpu.matmul %18, %19, %cst_10 {dimension_numbers = #tpu.dot_dimension_numbers<[1], [0], [0], [1], [0, 0, 1, 1], [], []>} : vector<64x32xbf16>, vector<32x48xbf16>, vector<64x48xf32> -> vector<64x48xf32>
    %21 = vector.extract_strided_slice %17 {offsets = [0, 0], sizes = [1, 48], strides = [1, 1]} : vector<3x48xf32> to vector<1x48xf32>
    %22 = vector.broadcast %21 : vector<1x48xf32> to vector<64x48xf32>
    %23 = arith.addf %20, %22 : vector<64x48xf32>
    %cst_11 = arith.constant dense<0.000000e+00> : vector<64xf32>
    %24 = vector.multi_reduction <add>, %23, %cst_11 [1] : vector<64x48xf32> to vector<64xf32>
    %25 = vector.shape_cast %24 : vector<64xf32> to vector<64x1xf32>
    %cst_12 = arith.constant 4.800000e+01 : f32
    %26 = vector.broadcast %cst_12 : f32 to vector<64x1xf32>
    %27 = arith.divf %25, %26 : vector<64x1xf32>
    %28 = vector.broadcast %27 : vector<64x1xf32> to vector<64x48xf32>
    %29 = arith.subf %23, %28 : vector<64x48xf32>
    %30 = arith.mulf %29, %29 : vector<64x48xf32>
    %cst_13 = arith.constant dense<0.000000e+00> : vector<64xf32>
    %31 = vector.multi_reduction <add>, %30, %cst_13 [1] : vector<64x48xf32> to vector<64xf32>
    %32 = vector.shape_cast %31 : vector<64xf32> to vector<64x1xf32>
    %cst_14 = arith.constant 4.800000e+01 : f32
    %33 = vector.broadcast %cst_14 : f32 to vector<64x1xf32>
    %34 = arith.divf %32, %33 : vector<64x1xf32>
    %35 = vector.broadcast %27 : vector<64x1xf32> to vector<64x48xf32>
    %36 = arith.subf %23, %35 : vector<64x48xf32>
    %cst_15 = arith.constant 9.99999974E-6 : f32
    %37 = vector.broadcast %cst_15 : f32 to vector<64x1xf32>
    %38 = arith.addf %34, %37 : vector<64x1xf32>
    %39 = math.rsqrt %38 : vector<64x1xf32>
    %40 = vector.broadcast %39 : vector<64x1xf32> to vector<64x48xf32>
    %41 = arith.mulf %36, %40 : vector<64x48xf32>
    %42 = vector.extract_strided_slice %17 {offsets = [1, 0], sizes = [1, 48], strides = [1, 1]} : vector<3x48xf32> to vector<1x48xf32>
    %43 = vector.broadcast %42 : vector<1x48xf32> to vector<64x48xf32>
    %44 = arith.mulf %41, %43 : vector<64x48xf32>
    %45 = vector.extract_strided_slice %17 {offsets = [2, 0], sizes = [1, 48], strides = [1, 1]} : vector<3x48xf32> to vector<1x48xf32>
    %46 = vector.broadcast %45 : vector<1x48xf32> to vector<64x48xf32>
    %47 = arith.addf %44, %46 : vector<64x48xf32>
    %48 = arith.truncf %47 : vector<64x48xf32> to vector<64x48xbf16>
    %c0_16 = arith.constant 0 : index
    %c0_17 = arith.constant 0 : index
    %49 = vector.load %arg5[%c0_16, %c0_17] : memref<48x64xbf16, #tpu.memory_space<vmem>>, vector<48x64xbf16>
    %cst_18 = arith.constant dense<0.000000e+00> : vector<64x64xf32>
    %50 = tpu.matmul %48, %49, %cst_18 {dimension_numbers = #tpu.dot_dimension_numbers<[1], [0], [0], [1], [0, 0, 1, 1], [], []>} : vector<64x48xbf16>, vector<48x64xbf16>, vector<64x64xf32> -> vector<64x64xf32>
    %c0_19 = arith.constant 0 : index
    %c0_20 = arith.constant 0 : index
    %51 = vector.load %arg6[%c0_19, %c0_20] : memref<1x64xf32, #tpu.memory_space<vmem>>, vector<1x64xf32>
    %52 = vector.broadcast %51 : vector<1x64xf32> to vector<64x64xf32>
    %53 = arith.addf %50, %52 : vector<64x64xf32>
    %54 = arith.mulf %53, %53 : vector<64x64xf32>
    %55 = arith.mulf %53, %54 : vector<64x64xf32>
    %cst_21 = arith.constant 4.471500e-02 : f32
    %56 = vector.broadcast %cst_21 : f32 to vector<64x64xf32>
    %57 = arith.mulf %56, %55 : vector<64x64xf32>
    %58 = arith.addf %53, %57 : vector<64x64xf32>
    %cst_22 = arith.constant 0.797884583 : f32
    %59 = vector.broadcast %cst_22 : f32 to vector<64x64xf32>
    %60 = arith.mulf %59, %58 : vector<64x64xf32>
    %61 = math.tanh %60 : vector<64x64xf32>
    %cst_23 = arith.constant 1.000000e+00 : f32
    %62 = vector.broadcast %cst_23 : f32 to vector<64x64xf32>
    %63 = arith.addf %62, %61 : vector<64x64xf32>
    %cst_24 = arith.constant 5.000000e-01 : f32
    %64 = vector.broadcast %cst_24 : f32 to vector<64x64xf32>
    %65 = arith.mulf %64, %63 : vector<64x64xf32>
    %66 = arith.mulf %53, %65 : vector<64x64xf32>
    %67 = arith.truncf %66 : vector<64x64xf32> to vector<64x64xbf16>
    %c0_25 = arith.constant 0 : index
    %c0_26 = arith.constant 0 : index
    %68 = vector.load %arg7[%c0_25, %c0_26] : memref<64x8xbf16, #tpu.memory_space<vmem>>, vector<64x8xbf16>
    %cst_27 = arith.constant dense<0.000000e+00> : vector<64x8xf32>
    %69 = tpu.matmul %67, %68, %cst_27 {dimension_numbers = #tpu.dot_dimension_numbers<[1], [0], [0], [1], [0, 0, 1, 1], [], []>} : vector<64x64xbf16>, vector<64x8xbf16>, vector<64x8xf32> -> vector<64x8xf32>
    %c0_28 = arith.constant 0 : index
    %c0_29 = arith.constant 0 : index
    %70 = vector.load %arg8[%c0_28, %c0_29] : memref<1x8xf32, #tpu.memory_space<vmem>>, vector<1x8xf32>
    %71 = vector.broadcast %70 : vector<1x8xf32> to vector<64x8xf32>
    %72 = arith.addf %69, %71 : vector<64x8xf32>
    %73 = vector.shape_cast %72 : vector<64x8xf32> to vector<1x64x8xf32>
    %74 = tpu.transpose %73, [0, 2, 1] : vector<1x64x8xf32> -> vector<1x8x64xf32>
    %cst_30 = arith.constant dense<0xFF800000> : vector<1x8xf32>
    %75 = vector.multi_reduction <maximumf>, %74, %cst_30 [2] : vector<1x8x64xf32> to vector<1x8xf32>
    %76 = vector.shape_cast %75 : vector<1x8xf32> to vector<1x8x1xf32>
    %77 = vector.broadcast %76 : vector<1x8x1xf32> to vector<1x8x64xf32>
    %78 = arith.subf %74, %77 : vector<1x8x64xf32>
    %79 = math.exp %78 : vector<1x8x64xf32>
    %cst_31 = arith.constant dense<0.000000e+00> : vector<1x8xf32>
    %80 = vector.multi_reduction <add>, %79, %cst_31 [2] : vector<1x8x64xf32> to vector<1x8xf32>
    %81 = vector.shape_cast %80 : vector<1x8xf32> to vector<1x8x1xf32>
    %82 = tpu.reciprocal %81 {approx = true} : vector<1x8x1xf32> -> vector<1x8x1xf32>
    %83 = vector.broadcast %82 : vector<1x8x1xf32> to vector<1x8x64xf32>
    %84 = arith.mulf %79, %83 : vector<1x8x64xf32>
    %85 = arith.truncf %23 : vector<64x48xf32> to vector<64x48xbf16>
    %86 = vector.shape_cast %85 : vector<64x48xbf16> to vector<1x64x48xbf16>
    %87 = arith.truncf %84 : vector<1x8x64xf32> to vector<1x8x64xbf16>
    "tpu.trace_start"() <{level = 10 : i32, message = "bts,bsc->btc"}> : () -> ()
    %cst_32 = arith.constant dense<0.000000e+00> : vector<1x8x48xf32>
    %88 = tpu.matmul %87, %86, %cst_32 {dimension_numbers = #tpu.dot_dimension_numbers<[2], [1], [1], [2], [0, 0, 0, 1, 1, 2], [0], [0]>} : vector<1x8x64xbf16>, vector<1x64x48xbf16>, vector<1x8x48xf32> -> vector<1x8x48xf32>
    "tpu.trace_stop"() : () -> ()
    %89 = vector.shape_cast %88 : vector<1x8x48xf32> to vector<8x48xf32>
    %c0_33 = arith.constant 0 : index
    %c0_34 = arith.constant 0 : index
    %c0_35 = arith.constant 0 : index
    %90 = vector.load %arg9[%c0_33, %c0_34, %c0_35] : memref<1x8x48xf32, #tpu.memory_space<vmem>>, vector<1x8x48xf32>
    %91 = vector.shape_cast %90 : vector<1x8x48xf32> to vector<8x48xf32>
    %92 = vector.shape_cast %89 : vector<8x48xf32> to vector<1x8x48xf32>
    tpu.vector_store %arg9[%c0_33, %c0_34, %c0_35], %92 {strides = array<i32>} : memref<1x8x48xf32, #tpu.memory_space<vmem>>, vector<1x8x48xf32>,
    return
  }
  func.func @transform_0(%arg0: i32) -> (i32, i32, i32) {
    %c0_i32 = arith.constant 0 : i32
    %c0_i32_0 = arith.constant 0 : i32
    %c0_i32_1 = arith.constant 0 : i32
    return %arg0, %c0_i32, %c0_i32_0 : i32, i32, i32
  }
  func.func @transform_1(%arg0: i32) -> (i32, i32) {
    %c0_i32 = arith.constant 0 : i32
    %c0_i32_0 = arith.constant 0 : i32
    %c0_i32_1 = arith.constant 0 : i32
    return %c0_i32, %c0_i32_0 : i32, i32
  }
  func.func @transform_2(%arg0: i32) -> (i32, i32) {
    %c0_i32 = arith.constant 0 : i32
    %c0_i32_0 = arith.constant 0 : i32
    %c0_i32_1 = arith.constant 0 : i32
    return %c0_i32, %c0_i32_0 : i32, i32
  }
  func.func @transform_3(%arg0: i32) -> (i32, i32) {
    %c0_i32 = arith.constant 0 : i32
    %c0_i32_0 = arith.constant 0 : i32
    %c0_i32_1 = arith.constant 0 : i32
    return %c0_i32, %c0_i32_0 : i32, i32
  }
  func.func @transform_4(%arg0: i32) -> (i32, i32) {
    %c0_i32 = arith.constant 0 : i32
    %c0_i32_0 = arith.constant 0 : i32
    %c0_i32_1 = arith.constant 0 : i32
    return %c0_i32, %c0_i32_0 : i32, i32
  }
  func.func @transform_5(%arg0: i32) -> (i32, i32) {
    %c0_i32 = arith.constant 0 : i32
    %c0_i32_0 = arith.constant 0 : i32
    %c0_i32_1 = arith.constant 0 : i32
    return %c0_i32, %c0_i32_0 : i32, i32
  }
  func.func @transform_6(%arg0: i32) -> (i32, i32) {
    %c0_i32 = arith.constant 0 : i32
    %c0_i32_0 = arith.constant 0 : i32
    %c0_i32_1 = arith.constant 0 : i32
    return %c0_i32, %c0_i32_0 : i32, i32
  }
  func.func @transform_7(%arg0: i32) -> (i32, i32) {
    %c0_i32 = arith.constant 0 : i32
    %c0_i32_0 = arith.constant 0 : i32
    %c0_i32_1 = arith.constant 0 : i32
    return %c0_i32, %c0_i32_0 : i32, i32
  }
  func.func @transform_8(%arg0: i32) -> (i32, i32, i32) {
    %c0_i32 = arith.constant 0 : i32
    %c0_i32_0 = arith.constant 0 : i32
    %c0_i32_1 = arith.constant 0 : i32
    return %arg0, %c0_i32, %c0_i32_0 : i32, i32, i32
  }
}

</mosaic_0001>

<llo_original>
// kernel: tpu_custom_call.1
$region0: #{tpu_custom_call.1}
  #allocation0 [shape = 'u32[]', space=smem, size = 0x4, offset = 0x4, fixed_abs, tag = 'smem constant byte address 0x4 - core index']
  #allocation1 [shape = 'u32[72,128]{1,0:T(1,128)}', space=vmem, size = 0x9000, scoped, tag = 'internal scratch']
  %s0 = inlined_call_operand.vmem [shape: bf16[2,64,48], index: 0, kind: input, shape index: {}]
  %s1 = inlined_call_operand.vmem [shape: bf16[48,96], index: 1, kind: input, shape index: {}]
  %s2 = inlined_call_operand.vmem [shape: bf16[32,48], index: 2, kind: input, shape index: {}]
  %s3 = inlined_call_operand.vmem [shape: f32[3,48], index: 3, kind: input, shape index: {}]
  %s4 = inlined_call_operand.vmem [shape: bf16[48,64], index: 4, kind: input, shape index: {}]
  %s5 = inlined_call_operand.vmem [shape: f32[1,64], index: 5, kind: input, shape index: {}]
  %s6 = inlined_call_operand.vmem [shape: bf16[64,8], index: 6, kind: input, shape index: {}]
  %s7 = inlined_call_operand.vmem [shape: f32[1,8], index: 7, kind: input, shape index: {}]
  %s8 = inlined_call_operand.hbm [shape: f32[2,8,48], index: 8, kind: output, shape index: {}]
  %s9 = sld [smem:[#allocation0]]
  $region65: #{tpu_custom_call.1} parent=0
    _
  %s11 = ssub.s32 1, %s9
  %s12 = scalar_select 0, %s11, %s9
  $region1: #{tpu_custom_call.1} parent=0
    #allocation2 [shape = 'u8[8192]{0}', space=vmem, size = 0x2000, scoped, tag = 'output window, operand 0']
    #allocation3 [shape = 's32[2]{0}', space=sflag, size = 0x8, scoped, tag = 'scoped memory for tpu_custom_call.1']
    %13 = vsyncpa [#allocation3], 0
    %s14 = scalar_lea.sflag [#allocation3], 1
    %15 = vsyncpa %s14, 0
    loop: start=0, step=1, limit=4
    $region2: #{tpu_custom_call.1} parent=1 // loop_pre_header
      _
    $region3: #{tpu_custom_call.1} parent=1 // loop_header
      %s17 = sphi 0, %s21
      %p18 = scmp.ge.s32.totalorder %s17, 4
      %s27 = sphi 0, %s29
      %s30 = sphi 0, %s27
      %s31 = sphi 0, %s30
      %s47 = sphi 0, %s31
      %s51 = sphi 0, %s51
      %s53 = sphi 0, %s51
      %s54 = sphi 0, %s53
      %s68 = sphi 0, %s54
      %s72 = sphi 0, %s72
      %s74 = sphi 0, %s72
      %s75 = sphi 0, %s74
      %s89 = sphi 0, %s75
      %s93 = sphi 0, %s93
      %s95 = sphi 0, %s93
      %s96 = sphi 0, %s95
      %s110 = sphi 0, %s96
      %s114 = sphi 0, %s114
      %s116 = sphi 0, %s114
      %s117 = sphi 0, %s116
      %s131 = sphi 0, %s117
      %s135 = sphi 0, %s135
      %s137 = sphi 0, %s135
      %s138 = sphi 0, %s137
      %s152 = sphi 0, %s138
      %s156 = sphi 0, %s156
      %s158 = sphi 0, %s156
      %s159 = sphi 0, %s158
      %s173 = sphi 0, %s159
      %s177 = sphi 0, %s177
      %s179 = sphi 0, %s177
      %s180 = sphi 0, %s179
      %s194 = sphi 0, %s180
      %s200 = sphi 0, %s202
      %s203 = sphi 0, %s200
      %s204 = sphi 0, %s203
      %s220 = sphi 0, %s204
    $region4: #{tpu_custom_call.1} parent=1 // loop_header_branch
      %20 = sbr.rel (%p18) target = $region8
    $region5: #{tpu_custom_call.1} parent=1 // loop_body
      %s22 = ssub.s32 %s17, 1
      %s23 = ssub.s32 %s17, 2
      %s24 = sadd.s32 %s17, 1
      %s25 = ssub.s32 %s17, %s24
      %p26 = scmp.eq.s32.totalorder %s25, 0
      %s28 = sadd.s32 %s27, 1
      %s29 = scalar_select %p26, %s27, %s28
      %p32 = pneg %p26
      %p33 = scmp.eq.s32.totalorder %s17, 1
      %p34 = por %p32, %p33
      %p35 = scmp.ne.s32.totalorder %s27, %s30
      %p36 = scmp.eq.s32.totalorder %s17, 0
      %p37 = por %p35, %p36
      %p38 = scmp.ne.s32.totalorder %s27, %s30
      %p39 = scmp.eq.s32.totalorder %s22, 1
      %p40 = por %p38, %p39
      %p41 = scmp.ne.s32.totalorder %s30, %s31
      %p42 = scmp.eq.s32.totalorder %s22, 0
      %p43 = por %p41, %p42
      %p44 = scmp.ne.s32.totalorder %s30, %s31
      %p45 = scmp.eq.s32.totalorder %s23, 1
      %p46 = por %p44, %p45
      %p48 = scmp.ne.s32.totalorder %s31, %s47
      %p49 = scmp.eq.s32.totalorder %s23, 0
      %p50 = por %p48, %p49
      %s52 = sadd.s32 %s51, 1
      %p55 = scmp.eq.s32.totalorder %s17, 1
      %p56 = scmp.ne.s32.totalorder %s51, %s53
      %p57 = scmp.eq.s32.totalorder %s17, 0
      %p58 = por %p56, %p57
      %p59 = scmp.ne.s32.totalorder %s51, %s53
      %p60 = scmp.eq.s32.totalorder %s22, 1
      %p61 = por %p59, %p60
      %p62 = scmp.ne.s32.totalorder %s53, %s54
      %p63 = scmp.eq.s32.totalorder %s22, 0
      %p64 = por %p62, %p63
      %p65 = scmp.ne.s32.totalorder %s53, %s54
      %p66 = scmp.eq.s32.totalorder %s23, 1
      %p67 = por %p65, %p66
      %p69 = scmp.ne.s32.totalorder %s54, %s68
      %p70 = scmp.eq.s32.totalorder %s23, 0
      %p71 = por %p69, %p70
      %s73 = sadd.s32 %s72, 1
      %p76 = scmp.eq.s32.totalorder %s17, 1
      %p77 = scmp.ne.s32.totalorder %s72, %s74
      %p78 = scmp.eq.s32.totalorder %s17, 0
      %p79 = por %p77, %p78
      %p80 = scmp.ne.s32.totalorder %s72, %s74
      %p81 = scmp.eq.s32.totalorder %s22, 1
      %p82 = por %p80, %p81
      %p83 = scmp.ne.s32.totalorder %s74, %s75
      %p84 = scmp.eq.s32.totalorder %s22, 0
      %p85 = por %p83, %p84
      %p86 = scmp.ne.s32.totalorder %s74, %s75
      %p87 = scmp.eq.s32.totalorder %s23, 1
      %p88 = por %p86, %p87
      %p90 = scmp.ne.s32.totalorder %s75, %s89
      %p91 = scmp.eq.s32.totalorder %s23, 0
      %p92 = por %p90, %p91
      %s94 = sadd.s32 %s93, 1
      %p97 = scmp.eq.s32.totalorder %s17, 1
      %p98 = scmp.ne.s32.totalorder %s93, %s95
      %p99 = scmp.eq.s32.totalorder %s17, 0
      %p100 = por %p98, %p99
      %p101 = scmp.ne.s32.totalorder %s93, %s95
      %p102 = scmp.eq.s32.totalorder %s22, 1
      %p103 = por %p101, %p102
      %p104 = scmp.ne.s32.totalorder %s95, %s96
      %p105 = scmp.eq.s32.totalorder %s22, 0
      %p106 = por %p104, %p105
      %p107 = scmp.ne.s32.totalorder %s95, %s96
      %p108 = scmp.eq.s32.totalorder %s23, 1
      %p109 = por %p107, %p108
      %p111 = scmp.ne.s32.totalorder %s96, %s110
      %p112 = scmp.eq.s32.totalorder %s23, 0
      %p113 = por %p111, %p112
      %s115 = sadd.s32 %s114, 1
      %p118 = scmp.eq.s32.totalorder %s17, 1
      %p119 = scmp.ne.s32.totalorder %s114, %s116
      %p120 = scmp.eq.s32.totalorder %s17, 0
      %p121 = por %p119, %p120
      %p122 = scmp.ne.s32.totalorder %s114, %s116
      %p123 = scmp.eq.s32.totalorder %s22, 1
      %p124 = por %p122, %p123
      %p125 = scmp.ne.s32.totalorder %s116, %s117
      %p126 = scmp.eq.s32.totalorder %s22, 0
      %p127 = por %p125, %p126
      %p128 = scmp.ne.s32.totalorder %s116, %s117
      %p129 = scmp.eq.s32.totalorder %s23, 1
      %p130 = por %p128, %p129
      %p132 = scmp.ne.s32.totalorder %s117, %s131
      %p133 = scmp.eq.s32.totalorder %s23, 0
      %p134 = por %p132, %p133
      %s136 = sadd.s32 %s135, 1
      %p139 = scmp.eq.s32.totalorder %s17, 1
      %p140 = scmp.ne.s32.totalorder %s135, %s137
      %p141 = scmp.eq.s32.totalorder %s17, 0
      %p142 = por %p140, %p141
      %p143 = scmp.ne.s32.totalorder %s135, %s137
      %p144 = scmp.eq.s32.totalorder %s22, 1
      %p145 = por %p143, %p144
      %p146 = scmp.ne.s32.totalorder %s137, %s138
      %p147 = scmp.eq.s32.totalorder %s22, 0
      %p148 = por %p146, %p147
      %p149 = scmp.ne.s32.totalorder %s137, %s138
      %p150 = scmp.eq.s32.totalorder %s23, 1
      %p151 = por %p149, %p150
      %p153 = scmp.ne.s32.totalorder %s138, %s152
      %p154 = scmp.eq.s32.totalorder %s23, 0
      %p155 = por %p153, %p154
      %s157 = sadd.s32 %s156, 1
      %p160 = scmp.eq.s32.totalorder %s17, 1
      %p161 = scmp.ne.s32.totalorder %s156, %s158
      %p162 = scmp.eq.s32.totalorder %s17, 0
      %p163 = por %p161, %p162
      %p164 = scmp.ne.s32.totalorder %s156, %s158
      %p165 = scmp.eq.s32.totalorder %s22, 1
      %p166 = por %p164, %p165
      %p167 = scmp.ne.s32.totalorder %s158, %s159
      %p168 = scmp.eq.s32.totalorder %s22, 0
      %p169 = por %p167, %p168
      %p170 = scmp.ne.s32.totalorder %s158, %s159
      %p171 = scmp.eq.s32.totalorder %s23, 1
      %p172 = por %p170, %p171
      %p174 = scmp.ne.s32.totalorder %s159, %s173
      %p175 = scmp.eq.s32.totalorder %s23, 0
      %p176 = por %p174, %p175
      %s178 = sadd.s32 %s177, 1
      %p181 = scmp.eq.s32.totalorder %s17, 1
      %p182 = scmp.ne.s32.totalorder %s177, %s179
      %p183 = scmp.eq.s32.totalorder %s17, 0
      %p184 = por %p182, %p183
      %p185 = scmp.ne.s32.totalorder %s177, %s179
      %p186 = scmp.eq.s32.totalorder %s22, 1
      %p187 = por %p185, %p186
      %p188 = scmp.ne.s32.totalorder %s179, %s180
      %p189 = scmp.eq.s32.totalorder %s22, 0
      %p190 = por %p188, %p189
      %p191 = scmp.ne.s32.totalorder %s179, %s180
      %p192 = scmp.eq.s32.totalorder %s23, 1
      %p193 = por %p191, %p192
      %p195 = scmp.ne.s32.totalorder %s180, %s194
      %p196 = scmp.eq.s32.totalorder %s23, 0
      %p197 = por %p195, %p196
      %s198 = ssub.s32 %s17, %s24
      %p199 = scmp.eq.s32.totalorder %s198, 0
      %s201 = sadd.s32 %s200, 1
      %s202 = scalar_select %p199, %s200, %s201
      %p205 = pneg %p199
      %p206 = scmp.eq.s32.totalorder %s17, 1
      %p207 = por %p205, %p206
      %p208 = scmp.ne.s32.totalorder %s200, %s203
      %p209 = scmp.eq.s32.totalorder %s17, 0
      %p210 = por %p208, %p209
      %p211 = scmp.ne.s32.totalorder %s200, %s203
      %p212 = scmp.eq.s32.totalorder %s22, 1
      %p213 = por %p211, %p212
      %p214 = scmp.ne.s32.totalorder %s203, %s204
      %p215 = scmp.eq.s32.totalorder %s22, 0
      %p216 = por %p214, %p215
      %p217 = scmp.ne.s32.totalorder %s203, %s204
      %p218 = scmp.eq.s32.totalorder %s23, 1
      %p219 = por %p217, %p218
      %p221 = scmp.ne.s32.totalorder %s204, %s220
      %p222 = scmp.eq.s32.totalorder %s23, 0
      %p223 = por %p221, %p222
      %p224 = scmp.le.s32.totalorder 1, %s17
      %p225 = scmp.lt.s32.totalorder %s17, 3
      %p226 = pnand %p224, %p225
      %p227 = pneg %p226
      // Predicated region
      $region9: #{tpu_custom_call.1} parent=5 // pred_check
        _
      $region10: #{tpu_custom_call.1} parent=5 // pred_check_branch
        %229 = sbr.rel (%p226) target = $region12
      $region11: #{tpu_custom_call.1} parent=5 // pred_region
        %s230 = ssub.s32 %s17, 1
        // Predicated region
        $region13: #{tpu_custom_call.1} parent=11 // pred_check
          %p231 = pneg %p64
        $region14: #{tpu_custom_call.1} parent=11 // pred_check_branch
          %233 = sbr.rel (%p231) target = $region16
        $region15: #{tpu_custom_call.1} parent=11 // pred_region
          _
        $region16: #{tpu_custom_call.1} parent=11 // pred_fallthru
          _
        // Predicated region
        $region17: #{tpu_custom_call.1} parent=11 // pred_check
          %p234 = pneg %p85
        $region18: #{tpu_custom_call.1} parent=11 // pred_check_branch
          %236 = sbr.rel (%p234) target = $region20
        $region19: #{tpu_custom_call.1} parent=11 // pred_region
          _
        $region20: #{tpu_custom_call.1} parent=11 // pred_fallthru
          _
        // Predicated region
        $region21: #{tpu_custom_call.1} parent=11 // pred_check
          %p237 = pneg %p106
        $region22: #{tpu_custom_call.1} parent=11 // pred_check_branch
          %239 = sbr.rel (%p237) target = $region24
        $region23: #{tpu_custom_call.1} parent=11 // pred_region
          _
        $region24: #{tpu_custom_call.1} parent=11 // pred_fallthru
          _
        // Predicated region
        $region25: #{tpu_custom_call.1} parent=11 // pred_check
          %p240 = pneg %p127
        $region26: #{tpu_custom_call.1} parent=11 // pred_check_branch
          %242 = sbr.rel (%p240) target = $region28
        $region27: #{tpu_custom_call.1} parent=11 // pred_region
          _
        $region28: #{tpu_custom_call.1} parent=11 // pred_fallthru
          _
        // Predicated region
        $region29: #{tpu_custom_call.1} parent=11 // pred_check
          %p243 = pneg %p148
        $region30: #{tpu_custom_call.1} parent=11 // pred_check_branch
          %245 = sbr.rel (%p243) target = $region32
        $region31: #{tpu_custom_call.1} parent=11 // pred_region
          _
        $region32: #{tpu_custom_call.1} parent=11 // pred_fallthru
          _
        // Predicated region
        $region33: #{tpu_custom_call.1} parent=11 // pred_check
          %p246 = pneg %p169
        $region34: #{tpu_custom_call.1} parent=11 // pred_check_branch
          %248 = sbr.rel (%p246) target = $region36
        $region35: #{tpu_custom_call.1} parent=11 // pred_region
          _
        $region36: #{tpu_custom_call.1} parent=11 // pred_fallthru
          _
        // Predicated region
        $region37: #{tpu_custom_call.1} parent=11 // pred_check
          %p249 = pneg %p190
        $region38: #{tpu_custom_call.1} parent=11 // pred_check_branch
          %251 = sbr.rel (%p249) target = $region40
        $region39: #{tpu_custom_call.1} parent=11 // pred_region
          _
        $region40: #{tpu_custom_call.1} parent=11 // pred_fallthru
          _
      $region12: #{tpu_custom_call.1} parent=5 // pred_fallthru
        _
      %p252 = scmp.lt.s32.totalorder %s17, 2
      // Predicated region
      $region41: #{tpu_custom_call.1} parent=5 // pred_check
        %p253 = pneg %p252
      $region42: #{tpu_custom_call.1} parent=5 // pred_check_branch
        %255 = sbr.rel (%p253) target = $region44
      $region43: #{tpu_custom_call.1} parent=5 // pred_region
        // Predicated region
        $region45: #{tpu_custom_call.1} parent=43 // pred_check
          %p256 = pneg %p37
        $region46: #{tpu_custom_call.1} parent=43 // pred_check_branch
          %258 = sbr.rel (%p256) target = $region48
        $region47: #{tpu_custom_call.1} parent=43 // pred_region
          %p259 = scmp.lt.s32.totalorder %s17, 1
          %s260 = scalar_select %p259, %s17, 1
          %s261 = smul.addr %s260, 8
          %s262 = smul.addr %s261, 4
          %s263 = scalar_lea.vmem %s0, %s262
        $region48: #{tpu_custom_call.1} parent=43 // pred_fallthru
          _
      $region44: #{tpu_custom_call.1} parent=5 // pred_fallthru
        _
      %p264 = scmp.le.s32.totalorder 1, %s17
      %p265 = scmp.lt.s32.totalorder %s17, 3
      %p266 = pnand %p264, %p265
      %p267 = pneg %p266
      // Predicated region
      $region49: #{tpu_custom_call.1} parent=5 // pred_check
        _
      $region50: #{tpu_custom_call.1} parent=5 // pred_check_branch
        %269 = sbr.rel (%p266) target = $region52
      $region51: #{tpu_custom_call.1} parent=5 // pred_region
        %s270 = ssub.s32 %s17, 1
        %p271 = scmp.lt.s32.totalorder %s22, 1
        %s272 = scalar_select %p271, %s22, 1
        %s273 = smul.addr %s272, 8
        %s274 = smul.addr %s273, 4
        %s275 = scalar_lea.vmem %s0, %s274
        %p276 = pneg %p43
        %p277 = pneg %p40
        %p278 = pneg %p64
        %p279 = pneg %p61
        %p280 = pneg %p85
        %p281 = pneg %p82
        %p282 = pneg %p106
        %p283 = pneg %p103
        %p284 = pneg %p127
        %p285 = pneg %p124
        %p286 = pneg %p148
        %p287 = pneg %p145
        %p288 = pneg %p169
        %p289 = pneg %p166
        %p290 = pneg %p190
        %p291 = pneg %p187
        %p292 = pneg %p216
        %p293 = pneg %p213
        %s294 = sand.u32 %s203, 1
        %s295 = scalar_lea.sflag [#allocation3], %s294
        %s296 = sand.u32 %s203, 1
        %s297 = smul.addr %s296, 8
        %s298 = scalar_lea.vmem [#allocation2], %s297
        %p299 = scmp.lt.s32.totalorder %s22, 1
        %s300 = scalar_select %p299, %s22, 1
        %s301 = smul.addr %s300, 8
        %s302 = smul.addr %s301, 4
        %s303 = scalar_lea.vmem %s0, %s302
        %v305 = vld [vmem:[%s303] sm:$0xf]
        %v306 = vld [vmem:[%s303 + $0x4] sm:$0xf]
        %v307 = vld [vmem:[%s303 + $0x8] sm:$0xf]
        %v308 = vld [vmem:[%s303 + $0xc] sm:$0xf]
        %v309 = vld [vmem:[%s303 + $0x10] sm:$0xf]
        %v310 = vld [vmem:[%s303 + $0x14] sm:$0xf]
        %v311 = vld [vmem:[%s303 + $0x18] sm:$0xf]
        %v312 = vld [vmem:[%s303 + $0x1c] sm:$0xf]
        %v313 = vld [vmem:[%s1] sm:$0xf]
        %v314 = vld [vmem:[%s1 + $0x4] sm:$0xf]
        %v315 = vld [vmem:[%s1 + $0x8] sm:$0xf]
        %v316 = vld [vmem:[%s1 + $0xc] sm:$0xf]
        %v317 = vld [vmem:[%s1 + $0x10] sm:$0xf]
        %v318 = vld [vmem:[%s1 + $0x14] sm:$0xf]
        %v327 = vunpack.c.l.b16 %v305
        %v328 = vunpack.c.l.b16 %v306
        %v329 = vunpack.c.l.b16 %v307
        %v330 = vunpack.c.l.b16 %v308
        %v331 = vunpack.c.l.b16 %v309
        %v332 = vunpack.c.l.b16 %v310
        %v333 = vunpack.c.l.b16 %v311
        %v334 = vunpack.c.l.b16 %v312
        %v335 = vpack.c.b16 %v328, %v327
        %v336 = vpack.c.b16 %v330, %v329
        %v337 = vpack.c.b16 %v332, %v331
        %v338 = vpack.c.b16 %v334, %v333
        %v345 = vunpack.c.l.b16 %v313
        %v346 = vunpack.c.l.b16 %v314
        %v347 = vunpack.c.l.b16 %v315
        %v348 = vunpack.c.l.b16 %v316
        %v349 = vunpack.c.l.b16 %v317
        %v350 = vunpack.c.l.b16 %v318
        %v351 = vpack.c.b16 %v346, %v345
        %v352 = vpack.c.b16 %v348, %v347
        %v353 = vpack.c.b16 %v350, %v349
        %vm357 = vcmask 392192
        %v359 = vsel %vm357, %v335, 0
        %v362 = vsel %vm357, %v336, 0
        %v365 = vsel %vm357, %v337, 0
        %v368 = vsel %vm357, %v338, 0
        %370 = vmatpush.bf16.msra.mxu0 0
        %371 = vmatpush.bf16.msra.mxu0 0
        %372 = vmatpush.bf16.msra.mxu0 0
        %373 = vmatpush.bf16.msra.mxu0 0
        %374 = vmatpush.bf16.msra.mxu0 0
        %375 = vmatpush.bf16.msra.mxu0 %v353
        %376 = vmatpush.bf16.msra.mxu0 %v352
        %377 = vmatpush.bf16.msra.mxu0 %v351
        %378 = vmatmul.bf16.gmra.mxu0 %v359
        %v379 = vpop.f32.mrf.mxu0
        %v380 = vadd.f32 0.0, %v379
        %v381 = vpop.f32.mrf.mxu0
        %v382 = vadd.f32 0.0, %v381
        %383 = vmatmul.bf16.gmra.mxu0 %v362
        %v384 = vpop.f32.mrf.mxu0
        %v385 = vadd.f32 0.0, %v384
        %v386 = vpop.f32.mrf.mxu0
        %v387 = vadd.f32 0.0, %v386
        %388 = vmatmul.bf16.gmra.mxu0 %v365
        %v389 = vpop.f32.mrf.mxu0
        %v390 = vadd.f32 0.0, %v389
        %v391 = vpop.f32.mrf.mxu0
        %v392 = vadd.f32 0.0, %v391
        %393 = vmatmul.bf16.gmra.mxu0 %v368
        %v394 = vpop.f32.mrf.mxu0
        %v395 = vadd.f32 0.0, %v394
        %v396 = vpop.f32.mrf.mxu0
        %v397 = vadd.f32 0.0, %v396
        %398 = vdwg.mxu0
        %v399 = vadd.f32 %v380, 1.0
        %v400 = vadd.f32 %v382, 1.0
        %v401 = vadd.f32 %v385, 1.0
        %v402 = vadd.f32 %v387, 1.0
        %v403 = vadd.f32 %v390, 1.0
        %v404 = vadd.f32 %v392, 1.0
        %v405 = vadd.f32 %v395, 1.0
        %v406 = vadd.f32 %v397, 1.0
        %415 = vrot.lane.b32.xlu0 %v399, 96
        %v416 = vpop.permute.xlu0 %415
        %417 = vrot.lane.b32.xlu0 %v400, 96
        %v418 = vpop.permute.xlu0 %417
        %419 = vrot.lane.b32.xlu0 %v401, 96
        %v420 = vpop.permute.xlu0 %419
        %421 = vrot.lane.b32.xlu0 %v402, 96
        %v422 = vpop.permute.xlu0 %421
        %423 = vrot.lane.b32.xlu0 %v403, 96
        %v424 = vpop.permute.xlu0 %423
        %425 = vrot.lane.b32.xlu0 %v404, 96
        %v426 = vpop.permute.xlu0 %425
        %427 = vrot.lane.b32.xlu0 %v405, 96
        %v428 = vpop.permute.xlu0 %427
        %429 = vrot.lane.b32.xlu0 %v406, 96
        %v430 = vpop.permute.xlu0 %429
        %v439 = vmul.f32 %v380, %v416
        %v440 = vmul.f32 %v382, %v418
        %v441 = vmul.f32 %v385, %v420
        %v442 = vmul.f32 %v387, %v422
        %v443 = vmul.f32 %v390, %v424
        %v444 = vmul.f32 %v392, %v426
        %v445 = vmul.f32 %v395, %v428
        %v446 = vmul.f32 %v397, %v430
        %455 = vrot.lane.b32.xlu0 %v380, 64
        %v456 = vpop.permute.xlu0 %455
        %457 = vrot.lane.b32.xlu0 %v382, 64
        %v458 = vpop.permute.xlu0 %457
        %459 = vrot.lane.b32.xlu0 %v385, 64
        %v460 = vpop.permute.xlu0 %459
        %461 = vrot.lane.b32.xlu0 %v387, 64
        %v462 = vpop.permute.xlu0 %461
        %463 = vrot.lane.b32.xlu0 %v390, 64
        %v464 = vpop.permute.xlu0 %463
        %465 = vrot.lane.b32.xlu0 %v392, 64
        %v466 = vpop.permute.xlu0 %465
        %467 = vrot.lane.b32.xlu0 %v395, 64
        %v468 = vpop.permute.xlu0 %467
        %469 = vrot.lane.b32.xlu0 %v397, 64
        %v470 = vpop.permute.xlu0 %469
        %v479 = vadd.f32 %v439, %v456
        %v480 = vadd.f32 %v440, %v458
        %v481 = vadd.f32 %v441, %v460
        %v482 = vadd.f32 %v442, %v462
        %v483 = vadd.f32 %v443, %v464
        %v484 = vadd.f32 %v444, %v466
        %v485 = vadd.f32 %v445, %v468
        %v486 = vadd.f32 %v446, %v470
        %v487 = vxor.u32 %v479, 2147483648
        %v488 = vxor.u32 %v480, 2147483648
        %v489 = vxor.u32 %v481, 2147483648
        %v490 = vxor.u32 %v482, 2147483648
        %v491 = vxor.u32 %v483, 2147483648
        %v492 = vxor.u32 %v484, 2147483648
        %v493 = vxor.u32 %v485, 2147483648
        %v494 = vxor.u32 %v486, 2147483648
        %v495 = vmul.f32 %v487, 1.442695
        %v496 = vpow.pop %v495
        %v497 = vmul.f32 %v488, 1.442695
        %v498 = vpow.pop %v497
        %v499 = vmul.f32 %v489, 1.442695
        %v500 = vpow.pop %v499
        %v501 = vmul.f32 %v490, 1.442695
        %v502 = vpow.pop %v501
        %v503 = vmul.f32 %v491, 1.442695
        %v504 = vpow.pop %v503
        %v505 = vmul.f32 %v492, 1.442695
        %v506 = vpow.pop %v505
        %v507 = vmul.f32 %v493, 1.442695
        %v508 = vpow.pop %v507
        %v509 = vmul.f32 %v494, 1.442695
        %v510 = vpow.pop %v509
        %v511 = vadd.f32 %v496, 1.0
        %v512 = vadd.f32 %v498, 1.0
        %v513 = vadd.f32 %v500, 1.0
        %v514 = vadd.f32 %v502, 1.0
        %v515 = vadd.f32 %v504, 1.0
        %v516 = vadd.f32 %v506, 1.0
        %v517 = vadd.f32 %v508, 1.0
        %v518 = vadd.f32 %v510, 1.0
        %v519 = vrcp.pop %v511
        %v520 = vmul.f32 %v511, %v519
        %v521 = vsub.f32 1.0, %v520
        %v522 = vmul.f32 %v519, %v521
        %v523 = vadd.f32 %v519, %v522
        %vm524 = vweird.f32 %v511
        %vm525 = vweird.f32 %v519
        %vm526 = vmor %vm524, %vm525
        %v527 = vsel %vm526, %v519, %v523
        %v528 = vand.u32 2147483647, %v511
        %vm529 = vcmp.eq.f32.partialorder %v528, 8.507059e+37
        %v530 = vand.u32 %v511, 2147483648
        %v531 = vor.u32 1.1754944e-38, %v530
        %v532 = vsel %vm529, %v531, %v527
        %v533 = vmul.f32 1.0, %v532
        %v534 = vrcp.pop %v512
        %v535 = vmul.f32 %v512, %v534
        %v536 = vsub.f32 1.0, %v535
        %v537 = vmul.f32 %v534, %v536
        %v538 = vadd.f32 %v534, %v537
        %vm539 = vweird.f32 %v512
        %vm540 = vweird.f32 %v534
        %vm541 = vmor %vm539, %vm540
        %v542 = vsel %vm541, %v534, %v538
        %v543 = vand.u32 2147483647, %v512
        %vm544 = vcmp.eq.f32.partialorder %v543, 8.507059e+37
        %v545 = vand.u32 %v512, 2147483648
        %v546 = vor.u32 1.1754944e-38, %v545
        %v547 = vsel %vm544, %v546, %v542
        %v548 = vmul.f32 1.0, %v547
        %v549 = vrcp.pop %v513
        %v550 = vmul.f32 %v513, %v549
        %v551 = vsub.f32 1.0, %v550
        %v552 = vmul.f32 %v549, %v551
        %v553 = vadd.f32 %v549, %v552
        %vm554 = vweird.f32 %v513
        %vm555 = vweird.f32 %v549
        %vm556 = vmor %vm554, %vm555
        %v557 = vsel %vm556, %v549, %v553
        %v558 = vand.u32 2147483647, %v513
        %vm559 = vcmp.eq.f32.partialorder %v558, 8.507059e+37
        %v560 = vand.u32 %v513, 2147483648
        %v561 = vor.u32 1.1754944e-38, %v560
        %v562 = vsel %vm559, %v561, %v557
        %v563 = vmul.f32 1.0, %v562
        %v564 = vrcp.pop %v514
        %v565 = vmul.f32 %v514, %v564
        %v566 = vsub.f32 1.0, %v565
        %v567 = vmul.f32 %v564, %v566
        %v568 = vadd.f32 %v564, %v567
        %vm569 = vweird.f32 %v514
        %vm570 = vweird.f32 %v564
        %vm571 = vmor %vm569, %vm570
        %v572 = vsel %vm571, %v564, %v568
        %v573 = vand.u32 2147483647, %v514
        %vm574 = vcmp.eq.f32.partialorder %v573, 8.507059e+37
        %v575 = vand.u32 %v514, 2147483648
        %v576 = vor.u32 1.1754944e-38, %v575
        %v577 = vsel %vm574, %v576, %v572
        %v578 = vmul.f32 1.0, %v577
        %v579 = vrcp.pop %v515
        %v580 = vmul.f32 %v515, %v579
        %v581 = vsub.f32 1.0, %v580
        %v582 = vmul.f32 %v579, %v581
        %v583 = vadd.f32 %v579, %v582
        %vm584 = vweird.f32 %v515
        %vm585 = vweird.f32 %v579
        %vm586 = vmor %vm584, %vm585
        %v587 = vsel %vm586, %v579, %v583
        %v588 = vand.u32 2147483647, %v515
        %vm589 = vcmp.eq.f32.partialorder %v588, 8.507059e+37
        %v590 = vand.u32 %v515, 2147483648
        %v591 = vor.u32 1.1754944e-38, %v590
        %v592 = vsel %vm589, %v591, %v587
        %v593 = vmul.f32 1.0, %v592
        %v594 = vrcp.pop %v516
        %v595 = vmul.f32 %v516, %v594
        %v596 = vsub.f32 1.0, %v595
        %v597 = vmul.f32 %v594, %v596
        %v598 = vadd.f32 %v594, %v597
        %vm599 = vweird.f32 %v516
        %vm600 = vweird.f32 %v594
        %vm601 = vmor %vm599, %vm600
        %v602 = vsel %vm601, %v594, %v598
        %v603 = vand.u32 2147483647, %v516
        %vm604 = vcmp.eq.f32.partialorder %v603, 8.507059e+37
        %v605 = vand.u32 %v516, 2147483648
        %v606 = vor.u32 1.1754944e-38, %v605
        %v607 = vsel %vm604, %v606, %v602
        %v608 = vmul.f32 1.0, %v607
        %v609 = vrcp.pop %v517
        %v610 = vmul.f32 %v517, %v609
        %v611 = vsub.f32 1.0, %v610
        %v612 = vmul.f32 %v609, %v611
        %v613 = vadd.f32 %v609, %v612
        %vm614 = vweird.f32 %v517
        %vm615 = vweird.f32 %v609
        %vm616 = vmor %vm614, %vm615
        %v617 = vsel %vm616, %v609, %v613
        %v618 = vand.u32 2147483647, %v517
        %vm619 = vcmp.eq.f32.partialorder %v618, 8.507059e+37
        %v620 = vand.u32 %v517, 2147483648
        %v621 = vor.u32 1.1754944e-38, %v620
        %v622 = vsel %vm619, %v621, %v617
        %v623 = vmul.f32 1.0, %v622
        %v624 = vrcp.pop %v518
        %v625 = vmul.f32 %v518, %v624
        %v626 = vsub.f32 1.0, %v625
        %v627 = vmul.f32 %v624, %v626
        %v628 = vadd.f32 %v624, %v627
        %vm629 = vweird.f32 %v518
        %vm630 = vweird.f32 %v624
        %vm631 = vmor %vm629, %vm630
        %v632 = vsel %vm631, %v624, %v628
        %v633 = vand.u32 2147483647, %v518
        %vm634 = vcmp.eq.f32.partialorder %v633, 8.507059e+37
        %v635 = vand.u32 %v518, 2147483648
        %v636 = vor.u32 1.1754944e-38, %v635
        %v637 = vsel %vm634, %v636, %v632
        %v638 = vmul.f32 1.0, %v637
        %v639 = vmul.f32 %v479, %v533
        %v640 = vmul.f32 %v480, %v548
        %v641 = vmul.f32 %v481, %v563
        %v642 = vmul.f32 %v482, %v578
        %v643 = vmul.f32 %v483, %v593
        %v644 = vmul.f32 %v484, %v608
        %v645 = vmul.f32 %v485, %v623
        %v646 = vmul.f32 %v486, %v638
        %v647 = vld [vmem:[%s3] sm:$0x7]
        %v648 = vpack.c.bf16 %v640, %v639
        %v649 = vpack.c.bf16 %v642, %v641
        %v650 = vpack.c.bf16 %v644, %v643
        %v651 = vpack.c.bf16 %v646, %v645
        %v652 = vld [vmem:[%s2] sm:$0xf]
        %v653 = vld [vmem:[%s2 + $0x4] sm:$0xf]
        %v654 = vld [vmem:[%s2 + $0x8] sm:$0xf]
        %v655 = vld [vmem:[%s2 + $0xc] sm:$0xf]
        %v656 = vperm.slane %v647, 0
        %v661 = vunpack.c.l.b16 %v652
        %v662 = vunpack.c.l.b16 %v653
        %v663 = vunpack.c.l.b16 %v654
        %v664 = vunpack.c.l.b16 %v655
        %v665 = vpack.c.b16 %v662, %v661
        %v666 = vpack.c.b16 %v664, %v663
        %vm669 = vcmask 261120
        %v671 = vsel %vm669, %v648, 0
        %v674 = vsel %vm669, %v649, 0
        %v677 = vsel %vm669, %v650, 0
        %v680 = vsel %vm669, %v651, 0
        %682 = vmatpush.bf16.msra.mxu0 0
        %683 = vmatpush.bf16.msra.mxu0 0
        %684 = vmatpush.bf16.msra.mxu0 0
        %685 = vmatpush.bf16.msra.mxu0 0
        %686 = vmatpush.bf16.msra.mxu0 0
        %687 = vmatpush.bf16.msra.mxu0 0
        %688 = vmatpush.bf16.msra.mxu0 %v666
        %689 = vmatpush.bf16.msra.mxu0 %v665
        %690 = vmatmul.bf16.gmra.mxu0 %v671
        %v691 = vpop.f32.mrf.mxu0
        %v692 = vadd.f32 %v656, %v691
        %v693 = vpop.f32.mrf.mxu0
        %v694 = vadd.f32 %v656, %v693
        %695 = vmatmul.bf16.gmra.mxu0 %v674
        %v696 = vpop.f32.mrf.mxu0
        %v697 = vadd.f32 %v656, %v696
        %v698 = vpop.f32.mrf.mxu0
        %v699 = vadd.f32 %v656, %v698
        %700 = vmatmul.bf16.gmra.mxu0 %v677
        %v701 = vpop.f32.mrf.mxu0
        %v702 = vadd.f32 %v656, %v701
        %v703 = vpop.f32.mrf.mxu0
        %v704 = vadd.f32 %v656, %v703
        %705 = vmatmul.bf16.gmra.mxu0 %v680
        %v706 = vpop.f32.mrf.mxu0
        %v707 = vadd.f32 %v656, %v706
        %v708 = vpop.f32.mrf.mxu0
        %v709 = vadd.f32 %v656, %v708
        %710 = vdwg.mxu0
        %v711 = vsel %vm357, %v692, 0.0
        %712 = vadd.xlane.f32.xlu0 %v711
        %v713 = vpop.xlane.xlu0 %712
        %v714 = vsel %vm357, %v694, 0.0
        %715 = vadd.xlane.f32.xlu0 %v714
        %v716 = vpop.xlane.xlu0 %715
        %v717 = vsel %vm357, %v697, 0.0
        %718 = vadd.xlane.f32.xlu0 %v717
        %v719 = vpop.xlane.xlu0 %718
        %v720 = vsel %vm357, %v699, 0.0
        %721 = vadd.xlane.f32.xlu0 %v720
        %v722 = vpop.xlane.xlu0 %721
        %v723 = vsel %vm357, %v702, 0.0
        %724 = vadd.xlane.f32.xlu0 %v723
        %v725 = vpop.xlane.xlu0 %724
        %v726 = vsel %vm357, %v704, 0.0
        %727 = vadd.xlane.f32.xlu0 %v726
        %v728 = vpop.xlane.xlu0 %727
        %v729 = vsel %vm357, %v707, 0.0
        %730 = vadd.xlane.f32.xlu0 %v729
        %v731 = vpop.xlane.xlu0 %730
        %v732 = vsel %vm357, %v709, 0.0
        %733 = vadd.xlane.f32.xlu0 %v732
        %v734 = vpop.xlane.xlu0 %733
        %v735 = vrcp.pop 48.0
        %v736 = vmul.f32 48.0, %v735
        %v737 = vsub.f32 1.0, %v736
        %v738 = vmul.f32 %v735, %v737
        %v739 = vadd.f32 %v735, %v738
        %vm740 = vweird.f32 %v735
        %v741 = vsel %vm740, %v735, %v739
        %v742 = vmul.f32 %v713, %v741
        %v743 = vmul.f32 %v716, %v741
        %v744 = vmul.f32 %v719, %v741
        %v745 = vmul.f32 %v722, %v741
        %v746 = vmul.f32 %v725, %v741
        %v747 = vmul.f32 %v728, %v741
        %v748 = vmul.f32 %v731, %v741
        %v749 = vmul.f32 %v734, %v741
        %v750 = vsub.f32 %v692, %v742
        %v751 = vsub.f32 %v694, %v743
        %v752 = vsub.f32 %v697, %v744
        %v753 = vsub.f32 %v699, %v745
        %v754 = vsub.f32 %v702, %v746
        %v755 = vsub.f32 %v704, %v747
        %v756 = vsub.f32 %v707, %v748
        %v757 = vsub.f32 %v709, %v749
        %v758 = vmul.f32 %v750, %v750
        %v759 = vmul.f32 %v751, %v751
        %v760 = vmul.f32 %v752, %v752
        %v761 = vmul.f32 %v753, %v753
        %v762 = vmul.f32 %v754, %v754
        %v763 = vmul.f32 %v755, %v755
        %v764 = vmul.f32 %v756, %v756
        %v765 = vmul.f32 %v757, %v757
        %v766 = vsel %vm357, %v758, 0.0
        %767 = vadd.xlane.f32.xlu0 %v766
        %v768 = vpop.xlane.xlu0 %767
        %v769 = vsel %vm357, %v759, 0.0
        %770 = vadd.xlane.f32.xlu0 %v769
        %v771 = vpop.xlane.xlu0 %770
        %v772 = vsel %vm357, %v760, 0.0
        %773 = vadd.xlane.f32.xlu0 %v772
        %v774 = vpop.xlane.xlu0 %773
        %v775 = vsel %vm357, %v761, 0.0
        %776 = vadd.xlane.f32.xlu0 %v775
        %v777 = vpop.xlane.xlu0 %776
        %v778 = vsel %vm357, %v762, 0.0
        %779 = vadd.xlane.f32.xlu0 %v778
        %v780 = vpop.xlane.xlu0 %779
        %v781 = vsel %vm357, %v763, 0.0
        %782 = vadd.xlane.f32.xlu0 %v781
        %v783 = vpop.xlane.xlu0 %782
        %v784 = vsel %vm357, %v764, 0.0
        %785 = vadd.xlane.f32.xlu0 %v784
        %v786 = vpop.xlane.xlu0 %785
        %v787 = vsel %vm357, %v765, 0.0
        %788 = vadd.xlane.f32.xlu0 %v787
        %v789 = vpop.xlane.xlu0 %788
        %v790 = vmul.f32 %v768, %v741
        %v791 = vmul.f32 %v771, %v741
        %v792 = vmul.f32 %v774, %v741
        %v793 = vmul.f32 %v777, %v741
        %v794 = vmul.f32 %v780, %v741
        %v795 = vmul.f32 %v783, %v741
        %v796 = vmul.f32 %v786, %v741
        %v797 = vmul.f32 %v789, %v741
        %v798 = vadd.f32 %v790, 1e-05
        %v799 = vadd.f32 %v791, 1e-05
        %v800 = vadd.f32 %v792, 1e-05
        %v801 = vadd.f32 %v793, 1e-05
        %v802 = vadd.f32 %v794, 1e-05
        %v803 = vadd.f32 %v795, 1e-05
        %v804 = vadd.f32 %v796, 1e-05
        %v805 = vadd.f32 %v797, 1e-05
        %v806 = vrsqrt.pop %v798
        %v807 = vmul.f32 %v806, %v798
        %v808 = vmul.f32 %v807, %v806
        %v809 = vmul.f32 0.5, %v808
        %v810 = vsub.f32 1.5, %v809
        %v811 = vmul.f32 %v806, %v810
        %vm812 = vweird.f32 %v798
        %vm813 = vweird.f32 %v806
        %vm814 = vmor %vm812, %vm813
        %v815 = vsel %vm814, %v806, %v811
        %v816 = vrsqrt.pop %v799
        %v817 = vmul.f32 %v816, %v799
        %v818 = vmul.f32 %v817, %v816
        %v819 = vmul.f32 0.5, %v818
        %v820 = vsub.f32 1.5, %v819
        %v821 = vmul.f32 %v816, %v820
        %vm822 = vweird.f32 %v799
        %vm823 = vweird.f32 %v816
        %vm824 = vmor %vm822, %vm823
        %v825 = vsel %vm824, %v816, %v821
        %v826 = vrsqrt.pop %v800
        %v827 = vmul.f32 %v826, %v800
        %v828 = vmul.f32 %v827, %v826
        %v829 = vmul.f32 0.5, %v828
        %v830 = vsub.f32 1.5, %v829
        %v831 = vmul.f32 %v826, %v830
        %vm832 = vweird.f32 %v800
        %vm833 = vweird.f32 %v826
        %vm834 = vmor %vm832, %vm833
        %v835 = vsel %vm834, %v826, %v831
        %v836 = vrsqrt.pop %v801
        %v837 = vmul.f32 %v836, %v801
        %v838 = vmul.f32 %v837, %v836
        %v839 = vmul.f32 0.5, %v838
        %v840 = vsub.f32 1.5, %v839
        %v841 = vmul.f32 %v836, %v840
        %vm842 = vweird.f32 %v801
        %vm843 = vweird.f32 %v836
        %vm844 = vmor %vm842, %vm843
        %v845 = vsel %vm844, %v836, %v841
        %v846 = vrsqrt.pop %v802
        %v847 = vmul.f32 %v846, %v802
        %v848 = vmul.f32 %v847, %v846
        %v849 = vmul.f32 0.5, %v848
        %v850 = vsub.f32 1.5, %v849
        %v851 = vmul.f32 %v846, %v850
        %vm852 = vweird.f32 %v802
        %vm853 = vweird.f32 %v846
        %vm854 = vmor %vm852, %vm853
        %v855 = vsel %vm854, %v846, %v851
        %v856 = vrsqrt.pop %v803
        %v857 = vmul.f32 %v856, %v803
        %v858 = vmul.f32 %v857, %v856
        %v859 = vmul.f32 0.5, %v858
        %v860 = vsub.f32 1.5, %v859
        %v861 = vmul.f32 %v856, %v860
        %vm862 = vweird.f32 %v803
        %vm863 = vweird.f32 %v856
        %vm864 = vmor %vm862, %vm863
        %v865 = vsel %vm864, %v856, %v861
        %v866 = vrsqrt.pop %v804
        %v867 = vmul.f32 %v866, %v804
        %v868 = vmul.f32 %v867, %v866
        %v869 = vmul.f32 0.5, %v868
        %v870 = vsub.f32 1.5, %v869
        %v871 = vmul.f32 %v866, %v870
        %vm872 = vweird.f32 %v804
        %vm873 = vweird.f32 %v866
        %vm874 = vmor %vm872, %vm873
        %v875 = vsel %vm874, %v866, %v871
        %v876 = vrsqrt.pop %v805
        %v877 = vmul.f32 %v876, %v805
        %v878 = vmul.f32 %v877, %v876
        %v879 = vmul.f32 0.5, %v878
        %v880 = vsub.f32 1.5, %v879
        %v881 = vmul.f32 %v876, %v880
        %vm882 = vweird.f32 %v805
        %vm883 = vweird.f32 %v876
        %vm884 = vmor %vm882, %vm883
        %v885 = vsel %vm884, %v876, %v881
        %v886 = vmul.f32 %v750, %v815
        %v887 = vmul.f32 %v751, %v825
        %v888 = vmul.f32 %v752, %v835
        %v889 = vmul.f32 %v753, %v845
        %v890 = vmul.f32 %v754, %v855
        %v891 = vmul.f32 %v755, %v865
        %v892 = vmul.f32 %v756, %v875
        %v893 = vmul.f32 %v757, %v885
        %v894 = vperm.slane %v647, 1
        %v895 = vmul.f32 %v886, %v894
        %v896 = vmul.f32 %v887, %v894
        %v897 = vmul.f32 %v888, %v894
        %v898 = vmul.f32 %v889, %v894
        %v899 = vmul.f32 %v890, %v894
        %v900 = vmul.f32 %v891, %v894
        %v901 = vmul.f32 %v892, %v894
        %v902 = vmul.f32 %v893, %v894
        %v903 = vperm.slane %v647, 2
        %v904 = vadd.f32 %v895, %v903
        %v905 = vadd.f32 %v896, %v903
        %v906 = vadd.f32 %v897, %v903
        %v907 = vadd.f32 %v898, %v903
        %v908 = vadd.f32 %v899, %v903
        %v909 = vadd.f32 %v900, %v903
        %v910 = vadd.f32 %v901, %v903
        %v911 = vadd.f32 %v902, %v903
        %v912 = vpack.c.bf16 %v905, %v904
        %v913 = vpack.c.bf16 %v907, %v906
        %v914 = vpack.c.bf16 %v909, %v908
        %v915 = vpack.c.bf16 %v911, %v910
        %v916 = vld [vmem:[%s4] sm:$0xf]
        %v917 = vld [vmem:[%s4 + $0x4] sm:$0xf]
        %v918 = vld [vmem:[%s4 + $0x8] sm:$0xf]
        %v919 = vld [vmem:[%s4 + $0xc] sm:$0xf]
        %v920 = vld [vmem:[%s4 + $0x10] sm:$0xf]
        %v921 = vld [vmem:[%s4 + $0x14] sm:$0xf]
        %v922 = vld [vmem:[%s5] sm:$0x1]
        %v924 = vperm.slane %v922, 0
        %v932 = vunpack.c.l.b16 %v916
        %v933 = vunpack.c.l.b16 %v917
        %v934 = vunpack.c.l.b16 %v918
        %v935 = vunpack.c.l.b16 %v919
        %v936 = vunpack.c.l.b16 %v920
        %v937 = vunpack.c.l.b16 %v921
        %v938 = vpack.c.b16 %v933, %v932
        %v939 = vpack.c.b16 %v935, %v934
        %v940 = vpack.c.b16 %v937, %v936
        %v945 = vsel %vm357, %v912, 0
        %v948 = vsel %vm357, %v913, 0
        %v951 = vsel %vm357, %v914, 0
        %v954 = vsel %vm357, %v915, 0
        %956 = vmatpush.bf16.msra.mxu0 0
        %957 = vmatpush.bf16.msra.mxu0 0
        %958 = vmatpush.bf16.msra.mxu0 0
        %959 = vmatpush.bf16.msra.mxu0 0
        %960 = vmatpush.bf16.msra.mxu0 0
        %961 = vmatpush.bf16.msra.mxu0 %v940
        %962 = vmatpush.bf16.msra.mxu0 %v939
        %963 = vmatpush.bf16.msra.mxu0 %v938
        %964 = vmatmul.bf16.gmra.mxu0 %v945
        %v965 = vpop.f32.mrf.mxu0
        %v966 = vadd.f32 %v924, %v965
        %v967 = vpop.f32.mrf.mxu0
        %v968 = vadd.f32 %v924, %v967
        %969 = vmatmul.bf16.gmra.mxu0 %v948
        %v970 = vpop.f32.mrf.mxu0
        %v971 = vadd.f32 %v924, %v970
        %v972 = vpop.f32.mrf.mxu0
        %v973 = vadd.f32 %v924, %v972
        %974 = vmatmul.bf16.gmra.mxu0 %v951
        %v975 = vpop.f32.mrf.mxu0
        %v976 = vadd.f32 %v924, %v975
        %v977 = vpop.f32.mrf.mxu0
        %v978 = vadd.f32 %v924, %v977
        %979 = vmatmul.bf16.gmra.mxu0 %v954
        %v980 = vpop.f32.mrf.mxu0
        %v981 = vadd.f32 %v924, %v980
        %v982 = vpop.f32.mrf.mxu0
        %v983 = vadd.f32 %v924, %v982
        %984 = vdwg.mxu0
        %v985 = vmul.f32 %v966, %v966
        %v986 = vmul.f32 %v968, %v968
        %v987 = vmul.f32 %v971, %v971
        %v988 = vmul.f32 %v973, %v973
        %v989 = vmul.f32 %v976, %v976
        %v990 = vmul.f32 %v978, %v978
        %v991 = vmul.f32 %v981, %v981
        %v992 = vmul.f32 %v983, %v983
        %v993 = vmul.f32 %v966, %v985
        %v994 = vmul.f32 %v968, %v986
        %v995 = vmul.f32 %v971, %v987
        %v996 = vmul.f32 %v973, %v988
        %v997 = vmul.f32 %v976, %v989
        %v998 = vmul.f32 %v978, %v990
        %v999 = vmul.f32 %v981, %v991
        %v1000 = vmul.f32 %v983, %v992
        %v1001 = vmul.f32 %v993, 0.044715
        %v1002 = vmul.f32 %v994, 0.044715
        %v1003 = vmul.f32 %v995, 0.044715
        %v1004 = vmul.f32 %v996, 0.044715
        %v1005 = vmul.f32 %v997, 0.044715
        %v1006 = vmul.f32 %v998, 0.044715
        %v1007 = vmul.f32 %v999, 0.044715
        %v1008 = vmul.f32 %v1000, 0.044715
        %v1009 = vadd.f32 %v966, %v1001
        %v1010 = vadd.f32 %v968, %v1002
        %v1011 = vadd.f32 %v971, %v1003
        %v1012 = vadd.f32 %v973, %v1004
        %v1013 = vadd.f32 %v976, %v1005
        %v1014 = vadd.f32 %v978, %v1006
        %v1015 = vadd.f32 %v981, %v1007
        %v1016 = vadd.f32 %v983, %v1008
        %v1017 = vmul.f32 %v1009, 0.7978846
        %v1018 = vmul.f32 %v1010, 0.7978846
        %v1019 = vmul.f32 %v1011, 0.7978846
        %v1020 = vmul.f32 %v1012, 0.7978846
        %v1021 = vmul.f32 %v1013, 0.7978846
        %v1022 = vmul.f32 %v1014, 0.7978846
        %v1023 = vmul.f32 %v1015, 0.7978846
        %v1024 = vmul.f32 %v1016, 0.7978846
        %v1025 = vtanh.pop %v1017
        %v1026 = vtanh.pop %v1018
        %v1027 = vtanh.pop %v1019
        %v1028 = vtanh.pop %v1020
        %v1029 = vtanh.pop %v1021
        %v1030 = vtanh.pop %v1022
        %v1031 = vtanh.pop %v1023
        %v1032 = vtanh.pop %v1024
        %v1033 = vadd.f32 %v1025, 1.0
        %v1034 = vadd.f32 %v1026, 1.0
        %v1035 = vadd.f32 %v1027, 1.0
        %v1036 = vadd.f32 %v1028, 1.0
        %v1037 = vadd.f32 %v1029, 1.0
        %v1038 = vadd.f32 %v1030, 1.0
        %v1039 = vadd.f32 %v1031, 1.0
        %v1040 = vadd.f32 %v1032, 1.0
        %v1041 = vmul.f32 %v1033, 0.5
        %v1042 = vmul.f32 %v1034, 0.5
        %v1043 = vmul.f32 %v1035, 0.5
        %v1044 = vmul.f32 %v1036, 0.5
        %v1045 = vmul.f32 %v1037, 0.5
        %v1046 = vmul.f32 %v1038, 0.5
        %v1047 = vmul.f32 %v1039, 0.5
        %v1048 = vmul.f32 %v1040, 0.5
        %v1049 = vmul.f32 %v966, %v1041
        %v1050 = vmul.f32 %v968, %v1042
        %v1051 = vmul.f32 %v971, %v1043
        %v1052 = vmul.f32 %v973, %v1044
        %v1053 = vmul.f32 %v976, %v1045
        %v1054 = vmul.f32 %v978, %v1046
        %v1055 = vmul.f32 %v981, %v1047
        %v1056 = vmul.f32 %v983, %v1048
        %v1057 = vpack.c.bf16 %v1050, %v1049
        %v1058 = vpack.c.bf16 %v1052, %v1051
        %v1059 = vpack.c.bf16 %v1054, %v1053
        %v1060 = vpack.c.bf16 %v1056, %v1055
        %v1061 = vld [vmem:[%s6] sm:$0xf]
        %v1062 = vld [vmem:[%s6 + $0x4] sm:$0xf]
        %v1063 = vld [vmem:[%s6 + $0x8] sm:$0xf]
        %v1064 = vld [vmem:[%s6 + $0xc] sm:$0xf]
        %v1065 = vld [vmem:[%s6 + $0x10] sm:$0xf]
        %v1066 = vld [vmem:[%s6 + $0x14] sm:$0xf]
        %v1067 = vld [vmem:[%s6 + $0x18] sm:$0xf]
        %v1068 = vld [vmem:[%s6 + $0x1c] sm:$0xf]
        %v1069 = vld [vmem:[%s7] sm:$0x1]
        %v1071 = vperm.slane %v1069, 0
        %v1081 = vunpack.c.l.b16 %v1061
        %v1082 = vunpack.c.l.b16 %v1062
        %v1083 = vunpack.c.l.b16 %v1063
        %v1084 = vunpack.c.l.b16 %v1064
        %v1085 = vunpack.c.l.b16 %v1065
        %v1086 = vunpack.c.l.b16 %v1066
        %v1087 = vunpack.c.l.b16 %v1067
        %v1088 = vunpack.c.l.b16 %v1068
        %v1089 = vpack.c.b16 %v1082, %v1081
        %v1090 = vpack.c.b16 %v1084, %v1083
        %v1091 = vpack.c.b16 %v1086, %v1085
        %v1092 = vpack.c.b16 %v1088, %v1087
        %vm1097 = vcmask 523264
        %v1099 = vsel %vm1097, %v1057, 0
        %v1102 = vsel %vm1097, %v1058, 0
        %v1105 = vsel %vm1097, %v1059, 0
        %v1108 = vsel %vm1097, %v1060, 0
        %1110 = vmatpush.bf16.msra.mxu0 0
        %1111 = vmatpush.bf16.msra.mxu0 0
        %1112 = vmatpush.bf16.msra.mxu0 0
        %1113 = vmatpush.bf16.msra.mxu0 0
        %1114 = vmatpush.bf16.msra.mxu0 %v1092
        %1115 = vmatpush.bf16.msra.mxu0 %v1091
        %1116 = vmatpush.bf16.msra.mxu0 %v1090
        %1117 = vmatpush.bf16.msra.mxu0 %v1089
        %1118 = vmatmul.bf16.gmra.mxu0 %v1099
        %v1119 = vpop.f32.mrf.mxu0
        %v1120 = vadd.f32 %v1071, %v1119
        %v1121 = vpop.f32.mrf.mxu0
        %v1122 = vadd.f32 %v1071, %v1121
        %1123 = vmatmul.bf16.gmra.mxu0 %v1102
        %v1124 = vpop.f32.mrf.mxu0
        %v1125 = vadd.f32 %v1071, %v1124
        %v1126 = vpop.f32.mrf.mxu0
        %v1127 = vadd.f32 %v1071, %v1126
        %1128 = vmatmul.bf16.gmra.mxu0 %v1105
        %v1129 = vpop.f32.mrf.mxu0
        %v1130 = vadd.f32 %v1071, %v1129
        %v1131 = vpop.f32.mrf.mxu0
        %v1132 = vadd.f32 %v1071, %v1131
        %1133 = vmatmul.bf16.gmra.mxu0 %v1108
        %v1134 = vpop.f32.mrf.mxu0
        %v1135 = vadd.f32 %v1071, %v1134
        %v1136 = vpop.f32.mrf.mxu0
        %v1137 = vadd.f32 %v1071, %v1136
        %1138 = vdwg.mxu0
        %1139 = vxpose.xlu0.b32.start [1/16] %v1120, 128
        %1140 = vxpose.xlu0.b32.cont [2/16] %v1122, 128
        %1141 = vxpose.xlu0.b32.cont [3/16] %v1125, 128
        %1142 = vxpose.xlu0.b32.cont [4/16] %v1127, 128
        %1143 = vxpose.xlu0.b32.cont [5/16] %v1130, 128
        %1144 = vxpose.xlu0.b32.cont [6/16] %v1132, 128
        %1145 = vxpose.xlu0.b32.cont [7/16] %v1135, 128
        %1146 = vxpose.xlu0.b32.cont [8/16] %v1137, 128
        %1147 = vxpose.xlu0.b32.cont [9/16] 0.0, 128
        %1148 = vxpose.xlu0.b32.cont [10/16] 0.0, 128
        %1149 = vxpose.xlu0.b32.cont [11/16] 0.0, 128
        %1150 = vxpose.xlu0.b32.cont [12/16] 0.0, 128
        %1151 = vxpose.xlu0.b32.cont [13/16] 0.0, 128
        %1152 = vxpose.xlu0.b32.cont [14/16] 0.0, 128
        %1153 = vxpose.xlu0.b32.cont [15/16] 0.0, 128
        %1154 = vxpose.xlu0.b32.end [16/16] 0.0, 128
        %v1155 = vpop.trf.xlu0
        %v1156 = vpop.trf.xlu0
        %v1157 = vpop.trf.xlu0
        %v1158 = vpop.trf.xlu0
        %v1159 = vpop.trf.xlu0
        %v1160 = vpop.trf.xlu0
        %v1161 = vpop.trf.xlu0
        %v1162 = vpop.trf.xlu0
        %v1163 = vpop.trf.xlu0
        %v1164 = vpop.trf.xlu0
        %v1165 = vpop.trf.xlu0
        %v1166 = vpop.trf.xlu0
        %v1167 = vpop.trf.xlu0
        %v1168 = vpop.trf.xlu0
        %v1169 = vpop.trf.xlu0
        %v1170 = vpop.trf.xlu0
        %v1171 = vsel %vm1097, %v1155, -inf
        %1172 = vmax.xlane.f32.xlu0 %v1171
        %v1173 = vpop.xlane.xlu0 %1172
        %v1174 = vsub.f32 %v1155, %v1173
        %v1175 = vmul.f32 %v1174, 1.442695
        %v1176 = vpow.pop %v1175
        %v1177 = vsel %vm1097, %v1176, 0.0
        %1178 = vadd.xlane.f32.xlu0 %v1177
        %v1179 = vpop.xlane.xlu0 %1178
        %v1180 = vrcp.pop %v1179
        %v1181 = vmul.f32 %v1176, %v1180
        %v1182 = vpack.c.bf16 %v692, %v692
        %v1183 = vpack.c.bf16 %v694, %v694
        %v1184 = vpack.c.bf16 %v697, %v697
        %v1185 = vpack.c.bf16 %v699, %v699
        %v1186 = vpack.c.bf16 %v702, %v702
        %v1187 = vpack.c.bf16 %v704, %v704
        %v1188 = vpack.c.bf16 %v707, %v707
        %v1189 = vpack.c.bf16 %v709, %v709
        %v1190 = vpack.c.bf16 %v1181, %v1181
        %v1199 = vunpack.c.l.b16 %v1182
        %v1200 = vunpack.c.l.b16 %v1183
        %v1201 = vunpack.c.l.b16 %v1184
        %v1202 = vunpack.c.l.b16 %v1185
        %v1203 = vunpack.c.l.b16 %v1186
        %v1204 = vunpack.c.l.b16 %v1187
        %v1205 = vunpack.c.l.b16 %v1188
        %v1206 = vunpack.c.l.b16 %v1189
        %v1207 = vpack.c.b16 %v1200, %v1199
        %v1208 = vpack.c.b16 %v1202, %v1201
        %v1209 = vpack.c.b16 %v1204, %v1203
        %v1210 = vpack.c.b16 %v1206, %v1205
        %v1216 = vsel %vm1097, %v1190, 0
        %1218 = vmatpush.bf16.msra.mxu0 0
        %1219 = vmatpush.bf16.msra.mxu0 0
        %1220 = vmatpush.bf16.msra.mxu0 0
        %1221 = vmatpush.bf16.msra.mxu0 0
        %1222 = vmatpush.bf16.msra.mxu0 %v1210
        %1223 = vmatpush.bf16.msra.mxu0 %v1209
        %1224 = vmatpush.bf16.msra.mxu0 %v1208
        %1225 = vmatpush.bf16.msra.mxu0 %v1207
        %1226 = vmatmul.bf16.gmra.mxu0 %v1216
        %v1227 = vpop.f32.mrf.mxu0
        %v1228 = vadd.f32 0.0, %v1227
        %v1229 = vpop.f32.mrf.mxu0
        %1230 = vdwg.mxu0
        %1231 = vst.msk [vmem:[%s298] sm:$0xff] %vm357, %v1228
        %s1232 = sand.u32 %s203, 1
        %s1233 = scalar_lea.sflag [#allocation3], %s1232
        %s1234 = sand.u32 %s203, 1
        %s1235 = smul.addr %s1234, 8
        %s1236 = scalar_lea.vmem [#allocation2], %s1235
        // Predicated region
        $region53: #{tpu_custom_call.1} parent=51 // pred_check
          %p1237 = pneg %p213
        $region54: #{tpu_custom_call.1} parent=51 // pred_check_branch
          %1239 = sbr.rel (%p1237) target = $region56
        $region55: #{tpu_custom_call.1} parent=51 // pred_region
          %1241 = vsyncadd %s1233, 0
          %s1242 = smul.addr %s22, 8
          %s1243 = scalar_lea.hbm %s8, %s1242
          %s1245 = sshll.u32 %s1236, 4
          %s1246 = int_to_ptr.vmem [resolvable:$true] %s1245
          %s1247 = sshll.u32 %s1243, 4
          %s1248 = int_to_ptr.hbm [resolvable:$true] %s1247
          %1250 = dma.vmem_to_hbm [thread:$0]  %s1246, 128, %s1248, %s1233
        $region56: #{tpu_custom_call.1} parent=51 // pred_fallthru
          _
      $region52: #{tpu_custom_call.1} parent=5 // pred_fallthru
        _
      %p1251 = scmp.le.s32.totalorder 2, %s17
      // Predicated region
      $region57: #{tpu_custom_call.1} parent=5 // pred_check
        %p1252 = pneg %p1251
      $region58: #{tpu_custom_call.1} parent=5 // pred_check_branch
        %1254 = sbr.rel (%p1252) target = $region60
      $region59: #{tpu_custom_call.1} parent=5 // pred_region
        %s1255 = ssub.s32 %s17, 2
        // Predicated region
        $region61: #{tpu_custom_call.1} parent=59 // pred_check
          %p1256 = pneg %p219
        $region62: #{tpu_custom_call.1} parent=59 // pred_check_branch
          %1258 = sbr.rel (%p1256) target = $region64
        $region63: #{tpu_custom_call.1} parent=59 // pred_region
          %s1259 = sand.u32 %s204, 1
          %s1260 = scalar_lea.sflag [#allocation3], %s1259
          %s1261 = sand.u32 %s204, 1
          %s1262 = smul.addr %s1261, 8
          %s1263 = scalar_lea.vmem [#allocation2], %s1262
          %1265 = dma.done %s1260, 128
        $region64: #{tpu_custom_call.1} parent=59 // pred_fallthru
          _
      $region60: #{tpu_custom_call.1} parent=5 // pred_fallthru
        _
    $region6: #{tpu_custom_call.1} parent=1 // loop_footer
      %s21 = sadd.s32 1, %s17
    $region7: #{tpu_custom_call.1} parent=1 // loop_footer_branch
      %16 = sbr.rel target = $region3
    $region8: #{tpu_custom_call.1} parent=1 // loop_exit
      _
    %1266 = vsyncpa [#allocation3], 1
    %s1267 = scalar_lea.sflag [#allocation3], 1
    %1268 = vsyncpa %s1267, 1

</llo_original>
